<compile_context>
chip_gen: v5e
topology: v5e:2x2
jax: 0.10.0
libtpu: 0.0.40
codegen_flags: <defaults>
</compile_context>

<pallas_src>
import jax
import jax.numpy as jnp
from jax.experimental import pallas as pl
from jax.experimental.pallas import tpu as pltpu


def _round_up(x, m):
    return ((x + m - 1) // m) * m


def _pad2(a, rows, cols, dtype):
    a = a.astype(dtype)
    return jnp.pad(a, ((0, rows - a.shape[0]), (0, cols - a.shape[1])))


# ---------------- fused GCN + MLP-head kernel (grid = rows x K) ---------------
def gcn_mlp_kernel(adj_ref, x_ref, w1_ref, b1_ref, w2_ref, b2_ref, w3_ref,
                   b3_ref, out_ref, acc_ref):
    k = pl.program_id(1)

    # Zero the f32 accumulator at the start of each row tile's K loop.
    @pl.when(k == 0)
    def _():
        acc_ref[...] = jnp.zeros_like(acc_ref)

    # Accumulate (A_tile @ X_tile) in f32.
    acc_ref[...] += jnp.dot(adj_ref[...], x_ref[...],
                            preferred_element_type=jnp.float32)

    # On the last K step: GCN weight + bias + ReLU, then the MLP head, store.
    @pl.when(k == pl.num_programs(1) - 1)
    def _():
        ax = acc_ref[...].astype(w1_ref.dtype)
        h = jnp.dot(ax, w1_ref[...],
                    preferred_element_type=jnp.float32) + b1_ref[...]
        h = jnp.maximum(h, 0.0)
        h2 = jnp.dot(h.astype(w2_ref.dtype), w2_ref[...],
                     preferred_element_type=jnp.float32) + b2_ref[...]
        h2 = jnp.maximum(h2, 0.0)
        out_ref[...] = (jnp.dot(h2.astype(w3_ref.dtype), w3_ref[...],
                                preferred_element_type=jnp.float32)
                        + b3_ref[...]).astype(out_ref.dtype)


def model_forward(adj, x, params, *, compute_dtype=jnp.bfloat16,
                  tm_max=512, tk_max=1024):
    """adj: (N, N) normalized adjacency, x: (N, F) node features."""
    w1, b1, w2, b2, w3, b3 = params
    n, f = x.shape
    hid, hid2, ncls = w1.shape[1], w2.shape[1], w3.shape[1]

    cd = compute_dtype
    db = jnp.dtype(cd).itemsize

    # Lane (last) dims pad to 128 for lane-dense stores / full-width MXU tiles.
    f_pad = _round_up(f, 128)
    h_pad = _round_up(hid, 128)
    h2_pad = _round_up(hid2, 128)
    c_pad = _round_up(ncls, 128)

    # Row tile (node dim) and contraction tile (adjacency cols / X rows).
    tm = min(tm_max, _round_up(n, 8))
    tk = min(tk_max, _round_up(n, 128))

    def vmem_est(tm_, tk_):
        return (2 * tm_ * tk_ * db                      # adj tile (x2 buffers)
                + 2 * tk_ * f_pad * db                  # x tile   (x2 buffers)
                + 2 * tm_ * c_pad * 4                   # out tile (x2 buffers)
                + tm_ * f_pad * 4                       # f32 accumulator scratch
                + 2 * (f_pad * h_pad + h_pad * h2_pad + h2_pad * c_pad) * db
                + 2 * (h_pad + h2_pad + c_pad) * 4      # biases
                + tm_ * (f_pad + h_pad + h2_pad) * 4)   # in-kernel temporaries

    # Conservative working-set budget (fits v7x's 64 MiB with headroom).
    budget = 36 * 1024 * 1024
    while vmem_est(tm, tk) > budget and tk > 128:
        tk = max(128, (tk // 2) // 128 * 128)
    while vmem_est(tm, tk) > budget and tm > 16:
        tm = max(8, (tm // 2) // 8 * 8)

    n_rows = _round_up(n, tm)   # padded node rows (output rows)
    n_cols = _round_up(n, tk)   # padded contraction width (adj cols / X rows)

    adj_p = _pad2(adj, n_rows, n_cols, cd)       # non-square when tm != tk
    x_p = _pad2(x, n_cols, f_pad, cd)
    w1_p = _pad2(w1, f_pad, h_pad, cd)
    w2_p = _pad2(w2, h_pad, h2_pad, cd)
    w3_p = _pad2(w3, h2_pad, c_pad, cd)
    b1_p = _pad2(b1, 1, h_pad, jnp.float32)
    b2_p = _pad2(b2, 1, h2_pad, jnp.float32)
    b3_p = _pad2(b3, 1, c_pad, jnp.float32)

    # Rows "parallel" (megacore / v7x 2-TC: n_rows//tm >= 2 when N > tm),
    # reduction axis "arbitrary" and last.
    grid = (n_rows // tm, n_cols // tk)

    est = vmem_est(tm, tk)
    vmem_limit = int(min(max(est * 3 // 2, 32 * 1024 * 1024),
                         56 * 1024 * 1024))

    out_p = pl.pallas_call(
        gcn_mlp_kernel,
        out_shape=jax.ShapeDtypeStruct((n_rows, c_pad), jnp.float32),
        grid=grid,
        in_specs=[
            pl.BlockSpec((tm, tk), lambda i, k: (i, k)),        # adj: streamed
            pl.BlockSpec((tk, f_pad), lambda i, k: (k, 0)),     # x:   streamed
            pl.BlockSpec((f_pad, h_pad), lambda i, k: (0, 0)),  # w1:  resident
            pl.BlockSpec((1, h_pad), lambda i, k: (0, 0)),      # b1
            pl.BlockSpec((h_pad, h2_pad), lambda i, k: (0, 0)), # w2
            pl.BlockSpec((1, h2_pad), lambda i, k: (0, 0)),     # b2
            pl.BlockSpec((h2_pad, c_pad), lambda i, k: (0, 0)), # w3
            pl.BlockSpec((1, c_pad), lambda i, k: (0, 0)),      # b3
        ],
        out_specs=pl.BlockSpec((tm, c_pad), lambda i, k: (i, 0)),
        scratch_shapes=[pltpu.VMEM((tm, f_pad), jnp.float32)],
        compiler_params=pltpu.CompilerParams(
            dimension_semantics=("parallel", "arbitrary"),
            vmem_limit_bytes=vmem_limit,
        ),
    )(adj_p, x_p, w1_p, b1_p, w2_p, b2_p, w3_p, b3_p)

    return out_p[:n, :ncls]


def make_params(key, num_features, hidden, hidden2, n_classes):
    k1, k2, k3 = jax.random.split(key, 3)
    w1 = jax.random.normal(k1, (num_features, hidden), jnp.float32) * 0.1
    b1 = jnp.zeros((1, hidden), jnp.float32)
    w2 = jax.random.normal(k2, (hidden, hidden2), jnp.float32) * 0.1
    b2 = jnp.zeros((1, hidden2), jnp.float32)
    w3 = jax.random.normal(k3, (hidden2, n_classes), jnp.float32) * 0.1
    b3 = jnp.zeros((1, n_classes), jnp.float32)
    return (w1, b1, w2, b2, w3, b3)


def make_normalized_adjacency(num_nodes):
    """Ring graph + self loops, symmetric normalization D^-1/2 (A+I) D^-1/2."""
    idx = jnp.arange(num_nodes)
    a = jnp.zeros((num_nodes, num_nodes), jnp.float32)
    a = a.at[idx, (idx + 1) % num_nodes].set(1.0)
    a = a.at[idx, (idx - 1) % num_nodes].set(1.0)
    a = a + jnp.eye(num_nodes, dtype=jnp.float32)
    deg = a.sum(axis=1)
    d_inv_sqrt = 1.0 / jnp.sqrt(deg)
    return a * d_inv_sqrt[:, None] * d_inv_sqrt[None, :]


def reference_forward(adj, x, params, compute_dtype):
    """Pure-JAX reference with the same op order / bf16-operand recipe."""
    w1, b1, w2, b2, w3, b3 = params
    cd = compute_dtype
    f32 = jnp.float32
    ax = jnp.dot(adj.astype(cd), x.astype(cd), preferred_element_type=f32)
    h = jnp.dot(ax.astype(cd), w1.astype(cd), preferred_element_type=f32) + b1
    h = jnp.maximum(h, 0.0)
    h2 = jnp.dot(h.astype(cd), w2.astype(cd), preferred_element_type=f32) + b2
    h2 = jnp.maximum(h2, 0.0)
    return jnp.dot(h2.astype(cd), w3.astype(cd), preferred_element_type=f32) + b3


if __name__ == "__main__":
    num_nodes = 8
    num_features = 32
    hidden = 32
    hidden2 = 16
    n_classes = 8

    key = jax.random.PRNGKey(0)
    kx, kp = jax.random.split(key)
    x = jax.random.normal(kx, (num_nodes, num_features), jnp.float32)
    adj = make_normalized_adjacency(num_nodes)
    params = make_params(kp, num_features, hidden, hidden2, n_classes)

    pred = model_forward(adj, x, params, compute_dtype=jnp.bfloat16)
    pred = jax.block_until_ready(pred)
    assert pred.shape == (num_nodes, n_classes)

    ref = reference_forward(adj, x, params, jnp.bfloat16)
    max_err = float(jnp.max(jnp.abs(pred - ref)))
    assert jnp.allclose(pred, ref, atol=2e-3, rtol=2e-3), max_err

    print("KERNEL_OK")
</pallas_src>

<mosaic_0001>
module attributes {stable_mosaic.version = 11 : i64} {
  func.func @gcn_mlp_kernel(%arg0: i32, %arg1: i32, %arg2: memref<8x128xbf16, #tpu.memory_space<vmem>>, %arg3: memref<128x128xbf16, #tpu.memory_space<vmem>>, %arg4: memref<128x128xbf16, #tpu.memory_space<vmem>>, %arg5: memref<1x128xf32, #tpu.memory_space<vmem>>, %arg6: memref<128x128xbf16, #tpu.memory_space<vmem>>, %arg7: memref<1x128xf32, #tpu.memory_space<vmem>>, %arg8: memref<128x128xbf16, #tpu.memory_space<vmem>>, %arg9: memref<1x128xf32, #tpu.memory_space<vmem>>, %arg10: memref<8x128xf32, #tpu.memory_space<vmem>>, %arg11: memref<8x128xf32, #tpu.memory_space<vmem>>) attributes {dimension_semantics = [#tpu.dimension_semantics<parallel>, #tpu.dimension_semantics<arbitrary>], iteration_bounds = array<i64: 1, 1>, scalar_prefetch = 0 : i64, scratch_operands = 1 : i64, tpu.core_type = #tpu.core_type<tc>, window_params = [{transform_indices = @transform_0, window_bounds = array<i64: 8, 128>}, {transform_indices = @transform_1, window_bounds = array<i64: 128, 128>}, {pipeline_mode = #tpu.pipeline_mode<synchronous>, transform_indices = @transform_2, window_bounds = array<i64: 128, 128>}, {pipeline_mode = #tpu.pipeline_mode<synchronous>, transform_indices = @transform_3, window_bounds = array<i64: 1, 128>}, {pipeline_mode = #tpu.pipeline_mode<synchronous>, transform_indices = @transform_4, window_bounds = array<i64: 128, 128>}, {pipeline_mode = #tpu.pipeline_mode<synchronous>, transform_indices = @transform_5, window_bounds = array<i64: 1, 128>}, {pipeline_mode = #tpu.pipeline_mode<synchronous>, transform_indices = @transform_6, window_bounds = array<i64: 128, 128>}, {pipeline_mode = #tpu.pipeline_mode<synchronous>, transform_indices = @transform_7, window_bounds = array<i64: 1, 128>}, {transform_indices = @transform_8, window_bounds = array<i64: 8, 128>}]} {
    %c0_i32 = arith.constant 0 : i32
    %0 = arith.cmpi eq, %arg1, %c0_i32 : i32
    %1 = arith.extui %0 : i1 to i32
    %c0_i32_0 = arith.constant 0 : i32
    %2 = arith.cmpi ne, %1, %c0_i32_0 : i32
    scf.if %2 {
      %cst_10 = arith.constant 0.000000e+00 : f32
      %12 = vector.broadcast %cst_10 : f32 to vector<8x128xf32>
      %c0_11 = arith.constant 0 : index
      %c0_12 = arith.constant 0 : index
      %13 = vector.load %arg11[%c0_11, %c0_12] : memref<8x128xf32, #tpu.memory_space<vmem>>, vector<8x128xf32>
      tpu.vector_store %arg11[%c0_11, %c0_12], %12 {strides = array<i32>} : memref<8x128xf32, #tpu.memory_space<vmem>>, vector<8x128xf32>,
    } else {
    }
    %c0 = arith.constant 0 : index
    %c0_1 = arith.constant 0 : index
    %3 = vector.load %arg11[%c0, %c0_1] : memref<8x128xf32, #tpu.memory_space<vmem>>, vector<8x128xf32>
    %c0_2 = arith.constant 0 : index
    %c0_3 = arith.constant 0 : index
    %4 = vector.load %arg2[%c0_2, %c0_3] : memref<8x128xbf16, #tpu.memory_space<vmem>>, vector<8x128xbf16>
    %c0_4 = arith.constant 0 : index
    %c0_5 = arith.constant 0 : index
    %5 = vector.load %arg3[%c0_4, %c0_5] : memref<128x128xbf16, #tpu.memory_space<vmem>>, vector<128x128xbf16>
    %cst = arith.constant dense<0.000000e+00> : vector<8x128xf32>
    %6 = tpu.matmul %4, %5, %cst {dimension_numbers = #tpu.dot_dimension_numbers<[1], [0], [0], [1], [0, 0, 1, 1], [], []>} : vector<8x128xbf16>, vector<128x128xbf16>, vector<8x128xf32> -> vector<8x128xf32>
    %7 = arith.addf %3, %6 : vector<8x128xf32>
    %c0_6 = arith.constant 0 : index
    %c0_7 = arith.constant 0 : index
    %8 = vector.load %arg11[%c0_6, %c0_7] : memref<8x128xf32, #tpu.memory_space<vmem>>, vector<8x128xf32>
    tpu.vector_store %arg11[%c0_6, %c0_7], %7 {strides = array<i32>} : memref<8x128xf32, #tpu.memory_space<vmem>>, vector<8x128xf32>,
    %c0_i32_8 = arith.constant 0 : i32
    %9 = arith.cmpi eq, %arg1, %c0_i32_8 : i32
    %10 = arith.extui %9 : i1 to i32
    %c0_i32_9 = arith.constant 0 : i32
    %11 = arith.cmpi ne, %10, %c0_i32_9 : i32
    scf.if %11 {
      %c0_10 = arith.constant 0 : index
      %c0_11 = arith.constant 0 : index
      %12 = vector.load %arg11[%c0_10, %c0_11] : memref<8x128xf32, #tpu.memory_space<vmem>>, vector<8x128xf32>
      %13 = arith.truncf %12 : vector<8x128xf32> to vector<8x128xbf16>
      %c0_12 = arith.constant 0 : index
      %c0_13 = arith.constant 0 : index
      %14 = vector.load %arg4[%c0_12, %c0_13] : memref<128x128xbf16, #tpu.memory_space<vmem>>, vector<128x128xbf16>
      %cst_14 = arith.constant dense<0.000000e+00> : vector<8x128xf32>
      %15 = tpu.matmul %13, %14, %cst_14 {dimension_numbers = #tpu.dot_dimension_numbers<[1], [0], [0], [1], [0, 0, 1, 1], [], []>} : vector<8x128xbf16>, vector<128x128xbf16>, vector<8x128xf32> -> vector<8x128xf32>
      %c0_15 = arith.constant 0 : index
      %c0_16 = arith.constant 0 : index
      %16 = vector.load %arg5[%c0_15, %c0_16] : memref<1x128xf32, #tpu.memory_space<vmem>>, vector<1x128xf32>
      %17 = vector.broadcast %16 : vector<1x128xf32> to vector<8x128xf32>
      %18 = arith.addf %15, %17 : vector<8x128xf32>
      %cst_17 = arith.constant 0.000000e+00 : f32
      %19 = vector.broadcast %cst_17 : f32 to vector<8x128xf32>
      %20 = arith.maximumf %18, %19 : vector<8x128xf32>
      %21 = arith.truncf %20 : vector<8x128xf32> to vector<8x128xbf16>
      %c0_18 = arith.constant 0 : index
      %c0_19 = arith.constant 0 : index
      %22 = vector.load %arg6[%c0_18, %c0_19] : memref<128x128xbf16, #tpu.memory_space<vmem>>, vector<128x128xbf16>
      %cst_20 = arith.constant dense<0.000000e+00> : vector<8x128xf32>
      %23 = tpu.matmul %21, %22, %cst_20 {dimension_numbers = #tpu.dot_dimension_numbers<[1], [0], [0], [1], [0, 0, 1, 1], [], []>} : vector<8x128xbf16>, vector<128x128xbf16>, vector<8x128xf32> -> vector<8x128xf32>
      %c0_21 = arith.constant 0 : index
      %c0_22 = arith.constant 0 : index
      %24 = vector.load %arg7[%c0_21, %c0_22] : memref<1x128xf32, #tpu.memory_space<vmem>>, vector<1x128xf32>
      %25 = vector.broadcast %24 : vector<1x128xf32> to vector<8x128xf32>
      %26 = arith.addf %23, %25 : vector<8x128xf32>
      %cst_23 = arith.constant 0.000000e+00 : f32
      %27 = vector.broadcast %cst_23 : f32 to vector<8x128xf32>
      %28 = arith.maximumf %26, %27 : vector<8x128xf32>
      %29 = arith.truncf %28 : vector<8x128xf32> to vector<8x128xbf16>
      %c0_24 = arith.constant 0 : index
      %c0_25 = arith.constant 0 : index
      %30 = vector.load %arg8[%c0_24, %c0_25] : memref<128x128xbf16, #tpu.memory_space<vmem>>, vector<128x128xbf16>
      %cst_26 = arith.constant dense<0.000000e+00> : vector<8x128xf32>
      %31 = tpu.matmul %29, %30, %cst_26 {dimension_numbers = #tpu.dot_dimension_numbers<[1], [0], [0], [1], [0, 0, 1, 1], [], []>} : vector<8x128xbf16>, vector<128x128xbf16>, vector<8x128xf32> -> vector<8x128xf32>
      %c0_27 = arith.constant 0 : index
      %c0_28 = arith.constant 0 : index
      %32 = vector.load %arg9[%c0_27, %c0_28] : memref<1x128xf32, #tpu.memory_space<vmem>>, vector<1x128xf32>
      %33 = vector.broadcast %32 : vector<1x128xf32> to vector<8x128xf32>
      %34 = arith.addf %31, %33 : vector<8x128xf32>
      %c0_29 = arith.constant 0 : index
      %c0_30 = arith.constant 0 : index
      %35 = vector.load %arg10[%c0_29, %c0_30] : memref<8x128xf32, #tpu.memory_space<vmem>>, vector<8x128xf32>
      tpu.vector_store %arg10[%c0_29, %c0_30], %34 {strides = array<i32>} : memref<8x128xf32, #tpu.memory_space<vmem>>, vector<8x128xf32>,
    } else {
    }
    return
  }
  func.func @transform_0(%arg0: i32, %arg1: i32) -> (i32, i32) {
    %c0_i32 = arith.constant 0 : i32
    return %arg0, %arg1 : i32, i32
  }
  func.func @transform_1(%arg0: i32, %arg1: i32) -> (i32, i32) {
    %c0_i32 = arith.constant 0 : i32
    %c0_i32_0 = arith.constant 0 : i32
    return %arg1, %c0_i32 : i32, i32
  }
  func.func @transform_2(%arg0: i32, %arg1: i32) -> (i32, i32) {
    %c0_i32 = arith.constant 0 : i32
    %c0_i32_0 = arith.constant 0 : i32
    %c0_i32_1 = arith.constant 0 : i32
    return %c0_i32, %c0_i32_0 : i32, i32
  }
  func.func @transform_3(%arg0: i32, %arg1: i32) -> (i32, i32) {
    %c0_i32 = arith.constant 0 : i32
    %c0_i32_0 = arith.constant 0 : i32
    %c0_i32_1 = arith.constant 0 : i32
    return %c0_i32, %c0_i32_0 : i32, i32
  }
  func.func @transform_4(%arg0: i32, %arg1: i32) -> (i32, i32) {
    %c0_i32 = arith.constant 0 : i32
    %c0_i32_0 = arith.constant 0 : i32
    %c0_i32_1 = arith.constant 0 : i32
    return %c0_i32, %c0_i32_0 : i32, i32
  }
  func.func @transform_5(%arg0: i32, %arg1: i32) -> (i32, i32) {
    %c0_i32 = arith.constant 0 : i32
    %c0_i32_0 = arith.constant 0 : i32
    %c0_i32_1 = arith.constant 0 : i32
    return %c0_i32, %c0_i32_0 : i32, i32
  }
  func.func @transform_6(%arg0: i32, %arg1: i32) -> (i32, i32) {
    %c0_i32 = arith.constant 0 : i32
    %c0_i32_0 = arith.constant 0 : i32
    %c0_i32_1 = arith.constant 0 : i32
    return %c0_i32, %c0_i32_0 : i32, i32
  }
  func.func @transform_7(%arg0: i32, %arg1: i32) -> (i32, i32) {
    %c0_i32 = arith.constant 0 : i32
    %c0_i32_0 = arith.constant 0 : i32
    %c0_i32_1 = arith.constant 0 : i32
    return %c0_i32, %c0_i32_0 : i32, i32
  }
  func.func @transform_8(%arg0: i32, %arg1: i32) -> (i32, i32) {
    %c0_i32 = arith.constant 0 : i32
    %c0_i32_0 = arith.constant 0 : i32
    return %arg0, %c0_i32 : i32, i32
  }
}

</mosaic_0001>

<llo_original>
// kernel: tpu_custom_call.1
$region0: #{tpu_custom_call.1}
  #allocation0 [shape = 'u32[]', space=smem, size = 0x4, offset = 0x4, fixed_abs, tag = 'smem constant byte address 0x4 - core index']
  #allocation1 [shape = 'u32[72,128]{1,0:T(1,128)}', space=vmem, size = 0x9000, scoped, tag = 'internal scratch']
  #allocation2 [shape = 'f32[8,128]{1,0:T(8,128)}', space=vmem, size = 0x1000, scoped, tag = 'scratch operand']
  %s0 = inlined_call_operand.hbm [shape: bf16[8,128], index: 0, kind: input, shape index: {}]
  %s1 = inlined_call_operand.hbm [shape: bf16[128,128], index: 1, kind: input, shape index: {}]
  %s2 = inlined_call_operand.hbm [shape: bf16[128,128], index: 2, kind: input, shape index: {}]
  %s3 = inlined_call_operand.vmem [shape: f32[1,128], index: 3, kind: input, shape index: {}]
  %s4 = inlined_call_operand.hbm [shape: bf16[128,128], index: 4, kind: input, shape index: {}]
  %s5 = inlined_call_operand.vmem [shape: f32[1,128], index: 5, kind: input, shape index: {}]
  %s6 = inlined_call_operand.hbm [shape: bf16[128,128], index: 6, kind: input, shape index: {}]
  %s7 = inlined_call_operand.vmem [shape: f32[1,128], index: 7, kind: input, shape index: {}]
  %s8 = inlined_call_operand.hbm [shape: f32[8,128], index: 8, kind: output, shape index: {}]
  %s9 = sld [smem:[#allocation0]]
  $region70: #{tpu_custom_call.1} parent=0
    _
  %s11 = ssub.s32 1, %s9
  %s12 = scalar_select 0, %s11, %s9
  $region1: #{tpu_custom_call.1} parent=0
    #allocation3 [shape = 'u8[2048]{0}', space=vmem, size = 0x800, scoped, tag = 'input window, operand 0, single buffered']
    #allocation4 [shape = 's32[1]{0}', space=sflag, size = 0x4, scoped, tag = 'scoped memory for tpu_custom_call.1']
    #allocation5 [shape = 's32[1]{0}', space=sflag, size = 0x4, scoped, tag = 'scoped memory for tpu_custom_call.1']
    #allocation6 [shape = 'u8[32768]{0}', space=vmem, size = 0x8000, scoped, tag = 'input window, operand 1, single buffered']
    #allocation7 [shape = 's32[1]{0}', space=sflag, size = 0x4, scoped, tag = 'scoped memory for tpu_custom_call.1']
    #allocation8 [shape = 'u8[32768]{0}', space=vmem, size = 0x8000, scoped, tag = 'input window, operand 2, single buffered']
    #allocation9 [shape = 'u8[32768]{0}', space=vmem, size = 0x8000, scoped, tag = 'input window, operand 4, single buffered']
    #allocation10 [shape = 's32[1]{0}', space=sflag, size = 0x4, scoped, tag = 'scoped memory for tpu_custom_call.1']
    #allocation11 [shape = 'u8[32768]{0}', space=vmem, size = 0x8000, scoped, tag = 'input window, operand 6, single buffered']
    #allocation12 [shape = 'u8[4096]{0}', space=vmem, size = 0x1000, scoped, tag = 'output window, operand 0, single buffered']
    %13 = vsyncpa [#allocation4], 0
    %14 = vsyncpa [#allocation7], 0
    %15 = vsyncpa [#allocation10], 0
    %16 = vsyncpa [#allocation5], 0
    // Predicated region
    $region2: #{tpu_custom_call.1} parent=1 // pred_check
      _
    $region3: #{tpu_custom_call.1} parent=1 // pred_check_branch
      %18 = sbr.rel (0) target = $region5
    $region4: #{tpu_custom_call.1} parent=1 // pred_region
      %20 = vsyncadd [#allocation4], 0
      %s22 = sshll.u32 %s0, 4
      %s23 = int_to_ptr.hbm [resolvable:$true] %s22
      %s24 = sshll.u32 [#allocation3], 4
      %s25 = int_to_ptr.vmem [resolvable:$true] %s24
      %27 = dma.hbm_to_vmem [thread:$0]  %s23, 64, %s25, [#allocation4]
    $region5: #{tpu_custom_call.1} parent=1 // pred_fallthru
      _
    // Predicated region
    $region6: #{tpu_custom_call.1} parent=1 // pred_check
      _
    $region7: #{tpu_custom_call.1} parent=1 // pred_check_branch
      %29 = sbr.rel (0) target = $region9
    $region8: #{tpu_custom_call.1} parent=1 // pred_region
      %31 = vsyncadd [#allocation7], 0
      %s32 = sshll.u32 %s1, 4
      %s33 = int_to_ptr.hbm [resolvable:$true] %s32
      %s34 = sshll.u32 [#allocation6], 4
      %s35 = int_to_ptr.vmem [resolvable:$true] %s34
      %40 = dma.hbm_to_vmem [thread:$0]  %s33, 1024, %s35, [#allocation7], 64, 64, 4
    $region9: #{tpu_custom_call.1} parent=1 // pred_fallthru
      _
    // Predicated region
    $region10: #{tpu_custom_call.1} parent=1 // pred_check
      _
    $region11: #{tpu_custom_call.1} parent=1 // pred_check_branch
      %42 = sbr.rel (0) target = $region13
    $region12: #{tpu_custom_call.1} parent=1 // pred_region
      %44 = vsyncadd [#allocation7], 0
      %s45 = sshll.u32 %s2, 4
      %s46 = int_to_ptr.hbm [resolvable:$true] %s45
      %s47 = sshll.u32 [#allocation8], 4
      %s48 = int_to_ptr.vmem [resolvable:$true] %s47
      %53 = dma.hbm_to_vmem [thread:$0]  %s46, 1024, %s48, [#allocation7], 64, 64, 4
    $region13: #{tpu_custom_call.1} parent=1 // pred_fallthru
      _
    // Predicated region
    $region14: #{tpu_custom_call.1} parent=1 // pred_check
      _
    $region15: #{tpu_custom_call.1} parent=1 // pred_check_branch
      %55 = sbr.rel (0) target = $region17
    $region16: #{tpu_custom_call.1} parent=1 // pred_region
      _
    $region17: #{tpu_custom_call.1} parent=1 // pred_fallthru
      _
    // Predicated region
    $region18: #{tpu_custom_call.1} parent=1 // pred_check
      _
    $region19: #{tpu_custom_call.1} parent=1 // pred_check_branch
      %57 = sbr.rel (0) target = $region21
    $region20: #{tpu_custom_call.1} parent=1 // pred_region
      %59 = vsyncadd [#allocation10], 0
      %s60 = sshll.u32 %s4, 4
      %s61 = int_to_ptr.hbm [resolvable:$true] %s60
      %s62 = sshll.u32 [#allocation9], 4
      %s63 = int_to_ptr.vmem [resolvable:$true] %s62
      %68 = dma.hbm_to_vmem [thread:$0]  %s61, 1024, %s63, [#allocation10], 64, 64, 4
    $region21: #{tpu_custom_call.1} parent=1 // pred_fallthru
      _
    // Predicated region
    $region22: #{tpu_custom_call.1} parent=1 // pred_check
      _
    $region23: #{tpu_custom_call.1} parent=1 // pred_check_branch
      %70 = sbr.rel (0) target = $region25
    $region24: #{tpu_custom_call.1} parent=1 // pred_region
      _
    $region25: #{tpu_custom_call.1} parent=1 // pred_fallthru
      _
    // Predicated region
    $region26: #{tpu_custom_call.1} parent=1 // pred_check
      _
    $region27: #{tpu_custom_call.1} parent=1 // pred_check_branch
      %72 = sbr.rel (0) target = $region29
    $region28: #{tpu_custom_call.1} parent=1 // pred_region
      %74 = vsyncadd [#allocation10], 0
      %s75 = sshll.u32 %s6, 4
      %s76 = int_to_ptr.hbm [resolvable:$true] %s75
      %s77 = sshll.u32 [#allocation11], 4
      %s78 = int_to_ptr.vmem [resolvable:$true] %s77
      %83 = dma.hbm_to_vmem [thread:$0]  %s76, 1024, %s78, [#allocation10], 64, 64, 4
    $region29: #{tpu_custom_call.1} parent=1 // pred_fallthru
      _
    // Predicated region
    $region30: #{tpu_custom_call.1} parent=1 // pred_check
      _
    $region31: #{tpu_custom_call.1} parent=1 // pred_check_branch
      %85 = sbr.rel (0) target = $region33
    $region32: #{tpu_custom_call.1} parent=1 // pred_region
      _
    $region33: #{tpu_custom_call.1} parent=1 // pred_fallthru
      _
    // Predicated region
    $region34: #{tpu_custom_call.1} parent=1 // pred_check
      _
    $region35: #{tpu_custom_call.1} parent=1 // pred_check_branch
      %87 = sbr.rel (0) target = $region37
    $region36: #{tpu_custom_call.1} parent=1 // pred_region
      %89 = dma.done [#allocation4], 64
    $region37: #{tpu_custom_call.1} parent=1 // pred_fallthru
      _
    // Predicated region
    $region38: #{tpu_custom_call.1} parent=1 // pred_check
      _
    $region39: #{tpu_custom_call.1} parent=1 // pred_check_branch
      %91 = sbr.rel (0) target = $region41
    $region40: #{tpu_custom_call.1} parent=1 // pred_region
      %93 = dma.done [#allocation7], 1024
    $region41: #{tpu_custom_call.1} parent=1 // pred_fallthru
      _
    // Predicated region
    $region42: #{tpu_custom_call.1} parent=1 // pred_check
      _
    $region43: #{tpu_custom_call.1} parent=1 // pred_check_branch
      %95 = sbr.rel (0) target = $region45
    $region44: #{tpu_custom_call.1} parent=1 // pred_region
      %97 = dma.done [#allocation7], 1024
    $region45: #{tpu_custom_call.1} parent=1 // pred_fallthru
      _
    // Predicated region
    $region46: #{tpu_custom_call.1} parent=1 // pred_check
      _
    $region47: #{tpu_custom_call.1} parent=1 // pred_check_branch
      %99 = sbr.rel (0) target = $region49
    $region48: #{tpu_custom_call.1} parent=1 // pred_region
      %101 = dma.done [#allocation10], 1024
    $region49: #{tpu_custom_call.1} parent=1 // pred_fallthru
      _
    // Predicated region
    $region50: #{tpu_custom_call.1} parent=1 // pred_check
      _
    $region51: #{tpu_custom_call.1} parent=1 // pred_check_branch
      %103 = sbr.rel (0) target = $region53
    $region52: #{tpu_custom_call.1} parent=1 // pred_region
      %105 = dma.done [#allocation10], 1024
    $region53: #{tpu_custom_call.1} parent=1 // pred_fallthru
      _
    %p106 = scmp.eq.s32.totalorder 0, 0
    // Predicated region
    $region54: #{tpu_custom_call.1} parent=1 // pred_check
      %p107 = pneg %p106
    $region55: #{tpu_custom_call.1} parent=1 // pred_check_branch
      %109 = sbr.rel (%p107) target = $region57
    $region56: #{tpu_custom_call.1} parent=1 // pred_region
      %110 = vst [vmem:[#allocation2] sm:$0xff] 0.0
    $region57: #{tpu_custom_call.1} parent=1 // pred_fallthru
      _
    %v111 = vld [vmem:[#allocation2] sm:$0xff]
    %v112 = vld [vmem:[#allocation3] sm:$0xf]
    %v113 = vld [vmem:[#allocation6] sm:$0xf]
    %v114 = vld [vmem:[#allocation6 + $0x4] sm:$0xf]
    %v115 = vld [vmem:[#allocation6 + $0x8] sm:$0xf]
    %v116 = vld [vmem:[#allocation6 + $0xc] sm:$0xf]
    %v117 = vld [vmem:[#allocation6 + $0x10] sm:$0xf]
    %v118 = vld [vmem:[#allocation6 + $0x14] sm:$0xf]
    %v119 = vld [vmem:[#allocation6 + $0x18] sm:$0xf]
    %v120 = vld [vmem:[#allocation6 + $0x1c] sm:$0xf]
    %v121 = vld [vmem:[#allocation6 + $0x20] sm:$0xf]
    %v122 = vld [vmem:[#allocation6 + $0x24] sm:$0xf]
    %v123 = vld [vmem:[#allocation6 + $0x28] sm:$0xf]
    %v124 = vld [vmem:[#allocation6 + $0x2c] sm:$0xf]
    %v125 = vld [vmem:[#allocation6 + $0x30] sm:$0xf]
    %v126 = vld [vmem:[#allocation6 + $0x34] sm:$0xf]
    %v127 = vld [vmem:[#allocation6 + $0x38] sm:$0xf]
    %v128 = vld [vmem:[#allocation6 + $0x3c] sm:$0xf]
    %v145 = vunpack.c.l.b16 %v113
    %v146 = vunpack.c.l.b16 %v114
    %v147 = vunpack.c.l.b16 %v115
    %v148 = vunpack.c.l.b16 %v116
    %v149 = vunpack.c.l.b16 %v117
    %v150 = vunpack.c.l.b16 %v118
    %v151 = vunpack.c.l.b16 %v119
    %v152 = vunpack.c.l.b16 %v120
    %v153 = vunpack.c.l.b16 %v121
    %v154 = vunpack.c.l.b16 %v122
    %v155 = vunpack.c.l.b16 %v123
    %v156 = vunpack.c.l.b16 %v124
    %v157 = vunpack.c.l.b16 %v125
    %v158 = vunpack.c.l.b16 %v126
    %v159 = vunpack.c.l.b16 %v127
    %v160 = vunpack.c.l.b16 %v128
    %v161 = vpack.c.b16 %v146, %v145
    %v162 = vpack.c.b16 %v148, %v147
    %v163 = vpack.c.b16 %v150, %v149
    %v164 = vpack.c.b16 %v152, %v151
    %v165 = vpack.c.b16 %v154, %v153
    %v166 = vpack.c.b16 %v156, %v155
    %v167 = vpack.c.b16 %v158, %v157
    %v168 = vpack.c.b16 %v160, %v159
    %177 = vmatpush.bf16.msra.mxu0 %v168
    %178 = vmatpush.bf16.msra.mxu0 %v167
    %179 = vmatpush.bf16.msra.mxu0 %v166
    %180 = vmatpush.bf16.msra.mxu0 %v165
    %181 = vmatpush.bf16.msra.mxu0 %v164
    %182 = vmatpush.bf16.msra.mxu0 %v163
    %183 = vmatpush.bf16.msra.mxu0 %v162
    %184 = vmatpush.bf16.msra.mxu0 %v161
    %185 = vmatmul.bf16.gmra.mxu0 %v112
    %v186 = vpop.f32.mrf.mxu0
    %v187 = vadd.f32 0.0, %v186
    %v188 = vpop.f32.mrf.mxu0
    %189 = vdwg.mxu0
    %v190 = vadd.f32 %v111, %v187
    %191 = vst [vmem:[#allocation2] sm:$0xff] %v190
    // Predicated region
    $region58: #{tpu_custom_call.1} parent=1 // pred_check
      %p192 = pneg %p106
    $region59: #{tpu_custom_call.1} parent=1 // pred_check_branch
      %194 = sbr.rel (%p192) target = $region61
    $region60: #{tpu_custom_call.1} parent=1 // pred_region
      %v195 = vld [vmem:[#allocation2] sm:$0xff]
      %v196 = vpack.c.bf16 %v195, %v195
      %v197 = vld [vmem:[#allocation8] sm:$0xf]
      %v198 = vld [vmem:[#allocation8 + $0x4] sm:$0xf]
      %v199 = vld [vmem:[#allocation8 + $0x8] sm:$0xf]
      %v200 = vld [vmem:[#allocation8 + $0xc] sm:$0xf]
      %v201 = vld [vmem:[#allocation8 + $0x10] sm:$0xf]
      %v202 = vld [vmem:[#allocation8 + $0x14] sm:$0xf]
      %v203 = vld [vmem:[#allocation8 + $0x18] sm:$0xf]
      %v204 = vld [vmem:[#allocation8 + $0x1c] sm:$0xf]
      %v205 = vld [vmem:[#allocation8 + $0x20] sm:$0xf]
      %v206 = vld [vmem:[#allocation8 + $0x24] sm:$0xf]
      %v207 = vld [vmem:[#allocation8 + $0x28] sm:$0xf]
      %v208 = vld [vmem:[#allocation8 + $0x2c] sm:$0xf]
      %v209 = vld [vmem:[#allocation8 + $0x30] sm:$0xf]
      %v210 = vld [vmem:[#allocation8 + $0x34] sm:$0xf]
      %v211 = vld [vmem:[#allocation8 + $0x38] sm:$0xf]
      %v212 = vld [vmem:[#allocation8 + $0x3c] sm:$0xf]
      %v213 = vld [vmem:[%s3] sm:$0x1]
      %v215 = vperm.slane %v213, 0
      %v233 = vunpack.c.l.b16 %v197
      %v234 = vunpack.c.l.b16 %v198
      %v235 = vunpack.c.l.b16 %v199
      %v236 = vunpack.c.l.b16 %v200
      %v237 = vunpack.c.l.b16 %v201
      %v238 = vunpack.c.l.b16 %v202
      %v239 = vunpack.c.l.b16 %v203
      %v240 = vunpack.c.l.b16 %v204
      %v241 = vunpack.c.l.b16 %v205
      %v242 = vunpack.c.l.b16 %v206
      %v243 = vunpack.c.l.b16 %v207
      %v244 = vunpack.c.l.b16 %v208
      %v245 = vunpack.c.l.b16 %v209
      %v246 = vunpack.c.l.b16 %v210
      %v247 = vunpack.c.l.b16 %v211
      %v248 = vunpack.c.l.b16 %v212
      %v249 = vpack.c.b16 %v234, %v233
      %v250 = vpack.c.b16 %v236, %v235
      %v251 = vpack.c.b16 %v238, %v237
      %v252 = vpack.c.b16 %v240, %v239
      %v253 = vpack.c.b16 %v242, %v241
      %v254 = vpack.c.b16 %v244, %v243
      %v255 = vpack.c.b16 %v246, %v245
      %v256 = vpack.c.b16 %v248, %v247
      %265 = vmatpush.bf16.msra.mxu0 %v256
      %266 = vmatpush.bf16.msra.mxu0 %v255
      %267 = vmatpush.bf16.msra.mxu0 %v254
      %268 = vmatpush.bf16.msra.mxu0 %v253
      %269 = vmatpush.bf16.msra.mxu0 %v252
      %270 = vmatpush.bf16.msra.mxu0 %v251
      %271 = vmatpush.bf16.msra.mxu0 %v250
      %272 = vmatpush.bf16.msra.mxu0 %v249
      %273 = vmatmul.bf16.gmra.mxu0 %v196
      %v274 = vpop.f32.mrf.mxu0
      %v275 = vadd.f32 %v215, %v274
      %v276 = vpop.f32.mrf.mxu0
      %277 = vdwg.mxu0
      %v278 = vmax.f32 %v275, 0.0
      %v279 = vpack.c.bf16 %v278, %v278
      %v280 = vld [vmem:[#allocation9] sm:$0xf]
      %v281 = vld [vmem:[#allocation9 + $0x4] sm:$0xf]
      %v282 = vld [vmem:[#allocation9 + $0x8] sm:$0xf]
      %v283 = vld [vmem:[#allocation9 + $0xc] sm:$0xf]
      %v284 = vld [vmem:[#allocation9 + $0x10] sm:$0xf]
      %v285 = vld [vmem:[#allocation9 + $0x14] sm:$0xf]
      %v286 = vld [vmem:[#allocation9 + $0x18] sm:$0xf]
      %v287 = vld [vmem:[#allocation9 + $0x1c] sm:$0xf]
      %v288 = vld [vmem:[#allocation9 + $0x20] sm:$0xf]
      %v289 = vld [vmem:[#allocation9 + $0x24] sm:$0xf]
      %v290 = vld [vmem:[#allocation9 + $0x28] sm:$0xf]
      %v291 = vld [vmem:[#allocation9 + $0x2c] sm:$0xf]
      %v292 = vld [vmem:[#allocation9 + $0x30] sm:$0xf]
      %v293 = vld [vmem:[#allocation9 + $0x34] sm:$0xf]
      %v294 = vld [vmem:[#allocation9 + $0x38] sm:$0xf]
      %v295 = vld [vmem:[#allocation9 + $0x3c] sm:$0xf]
      %v296 = vld [vmem:[%s5] sm:$0x1]
      %v298 = vperm.slane %v296, 0
      %v316 = vunpack.c.l.b16 %v280
      %v317 = vunpack.c.l.b16 %v281
      %v318 = vunpack.c.l.b16 %v282
      %v319 = vunpack.c.l.b16 %v283
      %v320 = vunpack.c.l.b16 %v284
      %v321 = vunpack.c.l.b16 %v285
      %v322 = vunpack.c.l.b16 %v286
      %v323 = vunpack.c.l.b16 %v287
      %v324 = vunpack.c.l.b16 %v288
      %v325 = vunpack.c.l.b16 %v289
      %v326 = vunpack.c.l.b16 %v290
      %v327 = vunpack.c.l.b16 %v291
      %v328 = vunpack.c.l.b16 %v292
      %v329 = vunpack.c.l.b16 %v293
      %v330 = vunpack.c.l.b16 %v294
      %v331 = vunpack.c.l.b16 %v295
      %v332 = vpack.c.b16 %v317, %v316
      %v333 = vpack.c.b16 %v319, %v318
      %v334 = vpack.c.b16 %v321, %v320
      %v335 = vpack.c.b16 %v323, %v322
      %v336 = vpack.c.b16 %v325, %v324
      %v337 = vpack.c.b16 %v327, %v326
      %v338 = vpack.c.b16 %v329, %v328
      %v339 = vpack.c.b16 %v331, %v330
      %348 = vmatpush.bf16.msra.mxu0 %v339
      %349 = vmatpush.bf16.msra.mxu0 %v338
      %350 = vmatpush.bf16.msra.mxu0 %v337
      %351 = vmatpush.bf16.msra.mxu0 %v336
      %352 = vmatpush.bf16.msra.mxu0 %v335
      %353 = vmatpush.bf16.msra.mxu0 %v334
      %354 = vmatpush.bf16.msra.mxu0 %v333
      %355 = vmatpush.bf16.msra.mxu0 %v332
      %356 = vmatmul.bf16.gmra.mxu0 %v279
      %v357 = vpop.f32.mrf.mxu0
      %v358 = vadd.f32 %v298, %v357
      %v359 = vpop.f32.mrf.mxu0
      %360 = vdwg.mxu0
      %v361 = vmax.f32 %v358, 0.0
      %v362 = vpack.c.bf16 %v361, %v361
      %v363 = vld [vmem:[#allocation11] sm:$0xf]
      %v364 = vld [vmem:[#allocation11 + $0x4] sm:$0xf]
      %v365 = vld [vmem:[#allocation11 + $0x8] sm:$0xf]
      %v366 = vld [vmem:[#allocation11 + $0xc] sm:$0xf]
      %v367 = vld [vmem:[#allocation11 + $0x10] sm:$0xf]
      %v368 = vld [vmem:[#allocation11 + $0x14] sm:$0xf]
      %v369 = vld [vmem:[#allocation11 + $0x18] sm:$0xf]
      %v370 = vld [vmem:[#allocation11 + $0x1c] sm:$0xf]
      %v371 = vld [vmem:[#allocation11 + $0x20] sm:$0xf]
      %v372 = vld [vmem:[#allocation11 + $0x24] sm:$0xf]
      %v373 = vld [vmem:[#allocation11 + $0x28] sm:$0xf]
      %v374 = vld [vmem:[#allocation11 + $0x2c] sm:$0xf]
      %v375 = vld [vmem:[#allocation11 + $0x30] sm:$0xf]
      %v376 = vld [vmem:[#allocation11 + $0x34] sm:$0xf]
      %v377 = vld [vmem:[#allocation11 + $0x38] sm:$0xf]
      %v378 = vld [vmem:[#allocation11 + $0x3c] sm:$0xf]
      %v379 = vld [vmem:[%s7] sm:$0x1]
      %v381 = vperm.slane %v379, 0
      %v399 = vunpack.c.l.b16 %v363
      %v400 = vunpack.c.l.b16 %v364
      %v401 = vunpack.c.l.b16 %v365
      %v402 = vunpack.c.l.b16 %v366
      %v403 = vunpack.c.l.b16 %v367
      %v404 = vunpack.c.l.b16 %v368
      %v405 = vunpack.c.l.b16 %v369
      %v406 = vunpack.c.l.b16 %v370
      %v407 = vunpack.c.l.b16 %v371
      %v408 = vunpack.c.l.b16 %v372
      %v409 = vunpack.c.l.b16 %v373
      %v410 = vunpack.c.l.b16 %v374
      %v411 = vunpack.c.l.b16 %v375
      %v412 = vunpack.c.l.b16 %v376
      %v413 = vunpack.c.l.b16 %v377
      %v414 = vunpack.c.l.b16 %v378
      %v415 = vpack.c.b16 %v400, %v399
      %v416 = vpack.c.b16 %v402, %v401
      %v417 = vpack.c.b16 %v404, %v403
      %v418 = vpack.c.b16 %v406, %v405
      %v419 = vpack.c.b16 %v408, %v407
      %v420 = vpack.c.b16 %v410, %v409
      %v421 = vpack.c.b16 %v412, %v411
      %v422 = vpack.c.b16 %v414, %v413
      %431 = vmatpush.bf16.msra.mxu0 %v422
      %432 = vmatpush.bf16.msra.mxu0 %v421
      %433 = vmatpush.bf16.msra.mxu0 %v420
      %434 = vmatpush.bf16.msra.mxu0 %v419
      %435 = vmatpush.bf16.msra.mxu0 %v418
      %436 = vmatpush.bf16.msra.mxu0 %v417
      %437 = vmatpush.bf16.msra.mxu0 %v416
      %438 = vmatpush.bf16.msra.mxu0 %v415
      %439 = vmatmul.bf16.gmra.mxu0 %v362
      %v440 = vpop.f32.mrf.mxu0
      %v441 = vadd.f32 %v381, %v440
      %v442 = vpop.f32.mrf.mxu0
      %443 = vdwg.mxu0
      %444 = vst [vmem:[#allocation12] sm:$0xff] %v441
    $region61: #{tpu_custom_call.1} parent=1 // pred_fallthru
      _
    // Predicated region
    $region62: #{tpu_custom_call.1} parent=1 // pred_check
      _
    $region63: #{tpu_custom_call.1} parent=1 // pred_check_branch
      %446 = sbr.rel (0) target = $region65
    $region64: #{tpu_custom_call.1} parent=1 // pred_region
      %448 = vsyncadd [#allocation5], 0
      %s450 = sshll.u32 [#allocation12], 4
      %s451 = int_to_ptr.vmem [resolvable:$true] %s450
      %s452 = sshll.u32 %s8, 4
      %s453 = int_to_ptr.hbm [resolvable:$true] %s452
      %455 = dma.vmem_to_hbm [thread:$0]  %s451, 128, %s453, [#allocation5]
    $region65: #{tpu_custom_call.1} parent=1 // pred_fallthru
      _
    // Predicated region
    $region66: #{tpu_custom_call.1} parent=1 // pred_check
      _
    $region67: #{tpu_custom_call.1} parent=1 // pred_check_branch
      %457 = sbr.rel (0) target = $region69
    $region68: #{tpu_custom_call.1} parent=1 // pred_region
      %459 = dma.done [#allocation5], 128
    $region69: #{tpu_custom_call.1} parent=1 // pred_fallthru
      _
    %460 = vsyncpa [#allocation4], 1
    %461 = vsyncpa [#allocation7], 1
    %462 = vsyncpa [#allocation10], 1
    %463 = vsyncpa [#allocation5], 1

</llo_original>
